<compile_context>
chip_gen: v7x
topology: tpu7x:2x2x1
jax: 0.10.0
libtpu: 0.0.40
codegen_flags: <defaults>
</compile_context>

<pallas_src>
import functools

import jax
import jax.numpy as jnp
from jax import lax
from jax.experimental import pallas as pl
from jax.experimental.pallas import tpu as pltpu

EPS = 1e-5


def _actor_kernel(o_ref,
                  w1_ref, g1_ref, be1_ref,
                  w2_ref, g2_ref, be2_ref,
                  w3_ref, b3_ref,
                  out_ref,
                  *, groups, bn_batch, matmul_dtype):
    x = o_ref[...].astype(jnp.float32)

    def linear_bn_relu(x, w_ref, g_ref, be_ref):
        # Hidden-layer Linear bias omitted: BatchNorm subtracts the per-group
        # mean immediately, so the bias cancels exactly.
        h = jnp.dot(x.astype(matmul_dtype), w_ref[...].astype(matmul_dtype),
                    preferred_element_type=jnp.float32)
        dout = h.shape[-1]
        # (groups*bn_batch, dout) -> (groups, bn_batch, dout): pure sublane
        # split when bn_batch % 8 == 0.  BN stats are per group over axis=1.
        hg = h.reshape(groups, bn_batch, dout)
        mu = jnp.mean(hg, axis=1, keepdims=True)                    # (G,1,dout)
        var = jnp.mean((hg - mu) ** 2, axis=1, keepdims=True)       # two-pass
        scale = g_ref[...] * lax.rsqrt(var + EPS)                   # EUP rsqrt
        shift = be_ref[...] - mu * scale
        hg = jnp.maximum(hg * scale + shift, 0.0)                   # BN + ReLU
        return hg.reshape(groups * bn_batch, dout)

    h1 = linear_bn_relu(x, w1_ref, g1_ref, be1_ref)
    h2 = linear_bn_relu(h1, w2_ref, g2_ref, be2_ref)

    logits = (jnp.dot(h2.astype(matmul_dtype), w3_ref[...].astype(matmul_dtype),
                      preferred_element_type=jnp.float32) + b3_ref[...])

    # Numerically-stable softmax over dim=1 (feature axis).  Exact division:
    # the approximate reciprocal is not worth losing row-sum-to-1 here.
    m = jnp.max(logits, axis=1, keepdims=True)
    e = jnp.exp(logits - m)
    out_ref[...] = (e / jnp.sum(e, axis=1, keepdims=True)).astype(out_ref.dtype)


def actor_forward(O, params, *, bn_batch=None, groups_per_step=None,
                  matmul_dtype=jnp.float32):
    """Fused Actor forward pass.

    O: (N, input_dim) float32.
    bn_batch=None -> whole N is one BatchNorm batch (exactly Actor.forward(O)).
    bn_batch=b    -> N//b independent forward passes (one BN batch each) fused
                     into a single launch.  By default ALL groups are processed
                     in one grid step (one matmul per layer).
    matmul_dtype  -> operand dtype fed to the MXU (f32 exact, bf16 for speed at
                     scale; accumulation and BN/softmax math stay f32).
    """
    (w1, _b1, g1, be1, w2, _b2, g2, be2, w3, b3) = params  # hidden biases unused
    N, D = O.shape
    A = w3.shape[1]
    H1, H2 = w1.shape[1], w2.shape[1]

    if bn_batch is None:
        bn_batch = N
    assert N % bn_batch == 0, "N must be a multiple of bn_batch"
    num_groups = N // bn_batch
    if groups_per_step is None:
        groups_per_step = num_groups          # collapse all groups: 1 grid step
    assert num_groups % groups_per_step == 0
    rows_per_step = groups_per_step * bn_batch
    assert rows_per_step == N or rows_per_step % 8 == 0, \
        "rows per grid step must be a multiple of 8 (or the full batch)"
    grid_steps = num_groups // groups_per_step

    # v7x has 64 MiB VMEM per TensorCore (32 MiB default scoped limit) vs
    # 128 MiB on v5e/v6e: keep the per-step f32 activation working set small.
    work_bytes = 4 * rows_per_step * (D + H1 + H2 + A) * 3  # acts + headroom
    assert work_bytes < 16 * 1024 * 1024, \
        "per-step working set too large for v7x VMEM; lower groups_per_step"

    flops = 2 * N * (D * H1 + H1 * H2 + H2 * A)
    transcendentals = N * A + num_groups * (H1 + H2)      # exp + rsqrt
    param_elems = sum(int(p.size) for p in (w1, g1, be1, w2, g2, be2, w3, b3))
    bytes_accessed = 4 * (N * D + N * A + param_elems)

    # Only shard the grid across TensorCores (v7x megacore) when each step
    # carries enough work; tiny steps would just duplicate weight DMAs.
    per_step_flops = flops // grid_steps
    sem = "parallel" if (grid_steps > 1 and per_step_flops >= 10_000_000) \
        else "arbitrary"

    def rep(arr):  # same whole-array block every step -> stays VMEM-resident
        return pl.BlockSpec(arr.shape, lambda s: (0, 0))

    kernel = functools.partial(_actor_kernel, groups=groups_per_step,
                               bn_batch=bn_batch, matmul_dtype=matmul_dtype)

    return pl.pallas_call(
        kernel,
        out_shape=jax.ShapeDtypeStruct((N, A), jnp.float32),
        grid=(grid_steps,),
        in_specs=[
            pl.BlockSpec((rows_per_step, D), lambda s: (s, 0)),
            rep(w1), rep(g1), rep(be1),
            rep(w2), rep(g2), rep(be2),
            rep(w3), rep(b3),
        ],
        out_specs=pl.BlockSpec((rows_per_step, A), lambda s: (s, 0)),
        compiler_params=pltpu.CompilerParams(dimension_semantics=(sem,)),
        cost_estimate=pl.CostEstimate(flops=flops,
                                      transcendentals=transcendentals,
                                      bytes_accessed=bytes_accessed),
    )(O, w1, g1, be1, w2, g2, be2, w3, b3)


def make_params(key, input_dim, output_dim, layer_sizes):
    """Deterministic synthetic parameters matching the Actor's layer shapes."""
    dims = [input_dim] + list(layer_sizes) + [output_dim]
    keys = jax.random.split(key, len(dims) - 1)
    params = []
    for i, (din, dout) in enumerate(zip(dims[:-1], dims[1:])):
        kw, kb = jax.random.split(keys[i])
        scale = 1.0 / jnp.sqrt(jnp.float32(din))
        params.append(jax.random.uniform(kw, (din, dout), jnp.float32, -scale, scale))
        params.append(jax.random.uniform(kb, (1, dout), jnp.float32, -scale, scale))
        if i < len(layer_sizes):  # hidden layers get BatchNorm (gamma, beta)
            params.append(jnp.ones((1, dout), jnp.float32))   # gamma
            params.append(jnp.zeros((1, dout), jnp.float32))  # beta
    return tuple(params)


def actor_reference(O, params, *, bn_batch=None):
    """Plain-JAX reference with the module's exact semantics, per BN batch."""
    (w1, b1, g1, be1, w2, b2, g2, be2, w3, b3) = params
    N = O.shape[0]
    if bn_batch is None:
        bn_batch = N

    def one(Ob):
        def lbr(x, w, b, g, be):
            h = x @ w + b
            mu = jnp.mean(h, axis=0, keepdims=True)
            var = jnp.mean((h - mu) ** 2, axis=0, keepdims=True)
            return jnp.maximum((h - mu) / jnp.sqrt(var + EPS) * g + be, 0.0)

        h = lbr(Ob, w1, b1, g1, be1)
        h = lbr(h, w2, b2, g2, be2)
        return jax.nn.softmax(h @ w3 + b3, axis=1)

    return jnp.concatenate(
        [one(O[i:i + bn_batch]) for i in range(0, N, bn_batch)], axis=0)


if __name__ == "__main__":
    key = jax.random.PRNGKey(0)
    k_obs, k_par = jax.random.split(key)

    bn_batch = 8           # batch size of one Actor.forward call
    num_batches = 4        # independent forward passes fused into one launch
    N = bn_batch * num_batches
    input_dim = 16
    layer_sizes = [32, 32]
    output_dim = 8

    O = jax.random.normal(k_obs, (N, input_dim), jnp.float32)
    params = make_params(k_par, input_dim, output_dim, layer_sizes)

    # (a) 4 independent (BN batch = 8) forward passes collapsed into ONE grid
    #     step: one matmul per layer, BN stats via (groups, 8, dout) reshape.
    out = jax.block_until_ready(actor_forward(O, params, bn_batch=bn_batch))
    ref = actor_reference(O, params, bn_batch=bn_batch)
    assert out.shape == (N, output_dim)
    assert jnp.allclose(jnp.sum(out, axis=1), 1.0, atol=1e-5)
    assert jnp.allclose(out, ref, atol=1e-4, rtol=1e-4)

    # (b) Whole-batch mode: exactly one Actor.forward(O) over all N rows.
    out_full = jax.block_until_ready(actor_forward(O, params))
    ref_full = actor_reference(O, params)
    assert jnp.allclose(jnp.sum(out_full, axis=1), 1.0, atol=1e-5)
    assert jnp.allclose(out_full, ref_full, atol=1e-4, rtol=1e-4)

    # (c) bf16 MXU operands (f32 accumulation / BN / softmax): the scale-up
    #     lever.  Softmax normalization is exact, so rows still sum to 1.
    out_bf16 = jax.block_until_ready(
        actor_forward(O, params, bn_batch=bn_batch, matmul_dtype=jnp.bfloat16))
    assert jnp.allclose(jnp.sum(out_bf16, axis=1), 1.0, atol=1e-5)
    assert jnp.allclose(out_bf16, ref, atol=5e-2)

    print("KERNEL_OK")
</pallas_src>

<mosaic_0001>
module attributes {stable_mosaic.version = 11 : i64} {
  func.func @_actor_kernel(%arg0: i32, %arg1: memref<32x16xf32, #tpu.memory_space<vmem>>, %arg2: memref<16x32xf32, #tpu.memory_space<vmem>>, %arg3: memref<1x32xf32, #tpu.memory_space<vmem>>, %arg4: memref<1x32xf32, #tpu.memory_space<vmem>>, %arg5: memref<32x32xf32, #tpu.memory_space<vmem>>, %arg6: memref<1x32xf32, #tpu.memory_space<vmem>>, %arg7: memref<1x32xf32, #tpu.memory_space<vmem>>, %arg8: memref<32x8xf32, #tpu.memory_space<vmem>>, %arg9: memref<1x8xf32, #tpu.memory_space<vmem>>, %arg10: memref<32x8xf32, #tpu.memory_space<vmem>>) attributes {dimension_semantics = [#tpu.dimension_semantics<arbitrary>], iteration_bounds = array<i64: 1>, scalar_prefetch = 0 : i64, scratch_operands = 0 : i64, tpu.core_type = #tpu.core_type<tc>, window_params = [{transform_indices = @transform_0, window_bounds = array<i64: 32, 16>}, {pipeline_mode = #tpu.pipeline_mode<synchronous>, transform_indices = @transform_1, window_bounds = array<i64: 16, 32>}, {pipeline_mode = #tpu.pipeline_mode<synchronous>, transform_indices = @transform_2, window_bounds = array<i64: 1, 32>}, {pipeline_mode = #tpu.pipeline_mode<synchronous>, transform_indices = @transform_3, window_bounds = array<i64: 1, 32>}, {pipeline_mode = #tpu.pipeline_mode<synchronous>, transform_indices = @transform_4, window_bounds = array<i64: 32, 32>}, {pipeline_mode = #tpu.pipeline_mode<synchronous>, transform_indices = @transform_5, window_bounds = array<i64: 1, 32>}, {pipeline_mode = #tpu.pipeline_mode<synchronous>, transform_indices = @transform_6, window_bounds = array<i64: 1, 32>}, {pipeline_mode = #tpu.pipeline_mode<synchronous>, transform_indices = @transform_7, window_bounds = array<i64: 32, 8>}, {pipeline_mode = #tpu.pipeline_mode<synchronous>, transform_indices = @transform_8, window_bounds = array<i64: 1, 8>}, {transform_indices = @transform_9, window_bounds = array<i64: 32, 8>}]} {
    %c0 = arith.constant 0 : index
    %c0_0 = arith.constant 0 : index
    %0 = vector.load %arg1[%c0, %c0_0] : memref<32x16xf32, #tpu.memory_space<vmem>>, vector<32x16xf32>
    %c0_1 = arith.constant 0 : index
    %c0_2 = arith.constant 0 : index
    %1 = vector.load %arg2[%c0_1, %c0_2] : memref<16x32xf32, #tpu.memory_space<vmem>>, vector<16x32xf32>
    %cst = arith.constant dense<0.000000e+00> : vector<32x32xf32>
    %2 = tpu.matmul %0, %1, %cst {dimension_numbers = #tpu.dot_dimension_numbers<[1], [0], [0], [1], [0, 0, 1, 1], [], []>} : vector<32x16xf32>, vector<16x32xf32>, vector<32x32xf32> -> vector<32x32xf32>
    %3 = vector.shape_cast %2 : vector<32x32xf32> to vector<4x8x32xf32>
    %cst_3 = arith.constant dense<0.000000e+00> : vector<4x32xf32>
    %4 = vector.multi_reduction <add>, %3, %cst_3 [1] : vector<4x8x32xf32> to vector<4x32xf32>
    %5 = vector.shape_cast %4 : vector<4x32xf32> to vector<4x1x32xf32>
    %cst_4 = arith.constant 8.000000e+00 : f32
    %6 = vector.broadcast %cst_4 : f32 to vector<4x1x32xf32>
    %7 = arith.divf %5, %6 : vector<4x1x32xf32>
    %8 = vector.broadcast %7 : vector<4x1x32xf32> to vector<4x8x32xf32>
    %9 = arith.subf %3, %8 : vector<4x8x32xf32>
    %10 = arith.mulf %9, %9 : vector<4x8x32xf32>
    %cst_5 = arith.constant dense<0.000000e+00> : vector<4x32xf32>
    %11 = vector.multi_reduction <add>, %10, %cst_5 [1] : vector<4x8x32xf32> to vector<4x32xf32>
    %12 = vector.shape_cast %11 : vector<4x32xf32> to vector<4x1x32xf32>
    %cst_6 = arith.constant 8.000000e+00 : f32
    %13 = vector.broadcast %cst_6 : f32 to vector<4x1x32xf32>
    %14 = arith.divf %12, %13 : vector<4x1x32xf32>
    %c0_7 = arith.constant 0 : index
    %c0_8 = arith.constant 0 : index
    %15 = vector.load %arg3[%c0_7, %c0_8] : memref<1x32xf32, #tpu.memory_space<vmem>>, vector<1x32xf32>
    %cst_9 = arith.constant 9.99999974E-6 : f32
    %16 = vector.broadcast %cst_9 : f32 to vector<4x1x32xf32>
    %17 = arith.addf %14, %16 : vector<4x1x32xf32>
    %18 = math.rsqrt %17 : vector<4x1x32xf32>
    %19 = vector.shape_cast %15 : vector<1x32xf32> to vector<1x1x32xf32>
    %20 = vector.broadcast %19 : vector<1x1x32xf32> to vector<4x1x32xf32>
    %21 = arith.mulf %20, %18 : vector<4x1x32xf32>
    %c0_10 = arith.constant 0 : index
    %c0_11 = arith.constant 0 : index
    %22 = vector.load %arg4[%c0_10, %c0_11] : memref<1x32xf32, #tpu.memory_space<vmem>>, vector<1x32xf32>
    %23 = arith.mulf %7, %21 : vector<4x1x32xf32>
    %24 = vector.shape_cast %22 : vector<1x32xf32> to vector<1x1x32xf32>
    %25 = vector.broadcast %24 : vector<1x1x32xf32> to vector<4x1x32xf32>
    %26 = arith.subf %25, %23 : vector<4x1x32xf32>
    %27 = vector.broadcast %21 : vector<4x1x32xf32> to vector<4x8x32xf32>
    %28 = arith.mulf %3, %27 : vector<4x8x32xf32>
    %29 = vector.broadcast %26 : vector<4x1x32xf32> to vector<4x8x32xf32>
    %30 = arith.addf %28, %29 : vector<4x8x32xf32>
    %cst_12 = arith.constant 0.000000e+00 : f32
    %31 = vector.broadcast %cst_12 : f32 to vector<4x8x32xf32>
    %32 = arith.maximumf %30, %31 : vector<4x8x32xf32>
    %33 = vector.shape_cast %32 : vector<4x8x32xf32> to vector<32x32xf32>
    %c0_13 = arith.constant 0 : index
    %c0_14 = arith.constant 0 : index
    %34 = vector.load %arg5[%c0_13, %c0_14] : memref<32x32xf32, #tpu.memory_space<vmem>>, vector<32x32xf32>
    %cst_15 = arith.constant dense<0.000000e+00> : vector<32x32xf32>
    %35 = tpu.matmul %33, %34, %cst_15 {dimension_numbers = #tpu.dot_dimension_numbers<[1], [0], [0], [1], [0, 0, 1, 1], [], []>} : vector<32x32xf32>, vector<32x32xf32>, vector<32x32xf32> -> vector<32x32xf32>
    %36 = vector.shape_cast %35 : vector<32x32xf32> to vector<4x8x32xf32>
    %cst_16 = arith.constant dense<0.000000e+00> : vector<4x32xf32>
    %37 = vector.multi_reduction <add>, %36, %cst_16 [1] : vector<4x8x32xf32> to vector<4x32xf32>
    %38 = vector.shape_cast %37 : vector<4x32xf32> to vector<4x1x32xf32>
    %cst_17 = arith.constant 8.000000e+00 : f32
    %39 = vector.broadcast %cst_17 : f32 to vector<4x1x32xf32>
    %40 = arith.divf %38, %39 : vector<4x1x32xf32>
    %41 = vector.broadcast %40 : vector<4x1x32xf32> to vector<4x8x32xf32>
    %42 = arith.subf %36, %41 : vector<4x8x32xf32>
    %43 = arith.mulf %42, %42 : vector<4x8x32xf32>
    %cst_18 = arith.constant dense<0.000000e+00> : vector<4x32xf32>
    %44 = vector.multi_reduction <add>, %43, %cst_18 [1] : vector<4x8x32xf32> to vector<4x32xf32>
    %45 = vector.shape_cast %44 : vector<4x32xf32> to vector<4x1x32xf32>
    %cst_19 = arith.constant 8.000000e+00 : f32
    %46 = vector.broadcast %cst_19 : f32 to vector<4x1x32xf32>
    %47 = arith.divf %45, %46 : vector<4x1x32xf32>
    %c0_20 = arith.constant 0 : index
    %c0_21 = arith.constant 0 : index
    %48 = vector.load %arg6[%c0_20, %c0_21] : memref<1x32xf32, #tpu.memory_space<vmem>>, vector<1x32xf32>
    %cst_22 = arith.constant 9.99999974E-6 : f32
    %49 = vector.broadcast %cst_22 : f32 to vector<4x1x32xf32>
    %50 = arith.addf %47, %49 : vector<4x1x32xf32>
    %51 = math.rsqrt %50 : vector<4x1x32xf32>
    %52 = vector.shape_cast %48 : vector<1x32xf32> to vector<1x1x32xf32>
    %53 = vector.broadcast %52 : vector<1x1x32xf32> to vector<4x1x32xf32>
    %54 = arith.mulf %53, %51 : vector<4x1x32xf32>
    %c0_23 = arith.constant 0 : index
    %c0_24 = arith.constant 0 : index
    %55 = vector.load %arg7[%c0_23, %c0_24] : memref<1x32xf32, #tpu.memory_space<vmem>>, vector<1x32xf32>
    %56 = arith.mulf %40, %54 : vector<4x1x32xf32>
    %57 = vector.shape_cast %55 : vector<1x32xf32> to vector<1x1x32xf32>
    %58 = vector.broadcast %57 : vector<1x1x32xf32> to vector<4x1x32xf32>
    %59 = arith.subf %58, %56 : vector<4x1x32xf32>
    %60 = vector.broadcast %54 : vector<4x1x32xf32> to vector<4x8x32xf32>
    %61 = arith.mulf %36, %60 : vector<4x8x32xf32>
    %62 = vector.broadcast %59 : vector<4x1x32xf32> to vector<4x8x32xf32>
    %63 = arith.addf %61, %62 : vector<4x8x32xf32>
    %cst_25 = arith.constant 0.000000e+00 : f32
    %64 = vector.broadcast %cst_25 : f32 to vector<4x8x32xf32>
    %65 = arith.maximumf %63, %64 : vector<4x8x32xf32>
    %66 = vector.shape_cast %65 : vector<4x8x32xf32> to vector<32x32xf32>
    %c0_26 = arith.constant 0 : index
    %c0_27 = arith.constant 0 : index
    %67 = vector.load %arg8[%c0_26, %c0_27] : memref<32x8xf32, #tpu.memory_space<vmem>>, vector<32x8xf32>
    %cst_28 = arith.constant dense<0.000000e+00> : vector<32x8xf32>
    %68 = tpu.matmul %66, %67, %cst_28 {dimension_numbers = #tpu.dot_dimension_numbers<[1], [0], [0], [1], [0, 0, 1, 1], [], []>} : vector<32x32xf32>, vector<32x8xf32>, vector<32x8xf32> -> vector<32x8xf32>
    %c0_29 = arith.constant 0 : index
    %c0_30 = arith.constant 0 : index
    %69 = vector.load %arg9[%c0_29, %c0_30] : memref<1x8xf32, #tpu.memory_space<vmem>>, vector<1x8xf32>
    %70 = vector.broadcast %69 : vector<1x8xf32> to vector<32x8xf32>
    %71 = arith.addf %68, %70 : vector<32x8xf32>
    %cst_31 = arith.constant dense<0xFF800000> : vector<32xf32>
    %72 = vector.multi_reduction <maximumf>, %71, %cst_31 [1] : vector<32x8xf32> to vector<32xf32>
    %73 = vector.shape_cast %72 : vector<32xf32> to vector<32x1xf32>
    %74 = vector.broadcast %73 : vector<32x1xf32> to vector<32x8xf32>
    %75 = arith.subf %71, %74 : vector<32x8xf32>
    %76 = math.exp %75 : vector<32x8xf32>
    %cst_32 = arith.constant dense<0.000000e+00> : vector<32xf32>
    %77 = vector.multi_reduction <add>, %76, %cst_32 [1] : vector<32x8xf32> to vector<32xf32>
    %78 = vector.shape_cast %77 : vector<32xf32> to vector<32x1xf32>
    %79 = vector.broadcast %78 : vector<32x1xf32> to vector<32x8xf32>
    %80 = arith.divf %76, %79 : vector<32x8xf32>
    %c0_33 = arith.constant 0 : index
    %c0_34 = arith.constant 0 : index
    %81 = vector.load %arg10[%c0_33, %c0_34] : memref<32x8xf32, #tpu.memory_space<vmem>>, vector<32x8xf32>
    tpu.vector_store %arg10[%c0_33, %c0_34], %80 {strides = array<i32>} : memref<32x8xf32, #tpu.memory_space<vmem>>, vector<32x8xf32>,
    return
  }
  func.func @transform_0(%arg0: i32) -> (i32, i32) {
    %c0_i32 = arith.constant 0 : i32
    %c0_i32_0 = arith.constant 0 : i32
    return %arg0, %c0_i32 : i32, i32
  }
  func.func @transform_1(%arg0: i32) -> (i32, i32) {
    %c0_i32 = arith.constant 0 : i32
    %c0_i32_0 = arith.constant 0 : i32
    %c0_i32_1 = arith.constant 0 : i32
    return %c0_i32, %c0_i32_0 : i32, i32
  }
  func.func @transform_2(%arg0: i32) -> (i32, i32) {
    %c0_i32 = arith.constant 0 : i32
    %c0_i32_0 = arith.constant 0 : i32
    %c0_i32_1 = arith.constant 0 : i32
    return %c0_i32, %c0_i32_0 : i32, i32
  }
  func.func @transform_3(%arg0: i32) -> (i32, i32) {
    %c0_i32 = arith.constant 0 : i32
    %c0_i32_0 = arith.constant 0 : i32
    %c0_i32_1 = arith.constant 0 : i32
    return %c0_i32, %c0_i32_0 : i32, i32
  }
  func.func @transform_4(%arg0: i32) -> (i32, i32) {
    %c0_i32 = arith.constant 0 : i32
    %c0_i32_0 = arith.constant 0 : i32
    %c0_i32_1 = arith.constant 0 : i32
    return %c0_i32, %c0_i32_0 : i32, i32
  }
  func.func @transform_5(%arg0: i32) -> (i32, i32) {
    %c0_i32 = arith.constant 0 : i32
    %c0_i32_0 = arith.constant 0 : i32
    %c0_i32_1 = arith.constant 0 : i32
    return %c0_i32, %c0_i32_0 : i32, i32
  }
  func.func @transform_6(%arg0: i32) -> (i32, i32) {
    %c0_i32 = arith.constant 0 : i32
    %c0_i32_0 = arith.constant 0 : i32
    %c0_i32_1 = arith.constant 0 : i32
    return %c0_i32, %c0_i32_0 : i32, i32
  }
  func.func @transform_7(%arg0: i32) -> (i32, i32) {
    %c0_i32 = arith.constant 0 : i32
    %c0_i32_0 = arith.constant 0 : i32
    %c0_i32_1 = arith.constant 0 : i32
    return %c0_i32, %c0_i32_0 : i32, i32
  }
  func.func @transform_8(%arg0: i32) -> (i32, i32) {
    %c0_i32 = arith.constant 0 : i32
    %c0_i32_0 = arith.constant 0 : i32
    %c0_i32_1 = arith.constant 0 : i32
    return %c0_i32, %c0_i32_0 : i32, i32
  }
  func.func @transform_9(%arg0: i32) -> (i32, i32) {
    %c0_i32 = arith.constant 0 : i32
    %c0_i32_0 = arith.constant 0 : i32
    return %arg0, %c0_i32 : i32, i32
  }
}

</mosaic_0001>

<llo_original>
// kernel: tpu_custom_call.1
$region0: #{tpu_custom_call.1}
  #allocation0 [shape = 'u32[]', space=smem, size = 0x4, offset = 0x4, fixed_abs, tag = 'smem constant byte address 0x4 - core index']
  #allocation1 [shape = 'u32[144,128]{1,0:T(1,128)}', space=vmem, size = 0x12000, scoped, tag = 'internal scratch']
  %s0 = inlined_call_operand.vmem [shape: f32[32,16], index: 0, kind: input, shape index: {}]
  %s1 = inlined_call_operand.vmem [shape: f32[16,32], index: 1, kind: input, shape index: {}]
  %s2 = inlined_call_operand.vmem [shape: f32[1,32], index: 2, kind: input, shape index: {}]
  %s3 = inlined_call_operand.vmem [shape: f32[1,32], index: 3, kind: input, shape index: {}]
  %s4 = inlined_call_operand.vmem [shape: f32[32,32], index: 4, kind: input, shape index: {}]
  %s5 = inlined_call_operand.vmem [shape: f32[1,32], index: 5, kind: input, shape index: {}]
  %s6 = inlined_call_operand.vmem [shape: f32[1,32], index: 6, kind: input, shape index: {}]
  %s7 = inlined_call_operand.vmem [shape: f32[32,8], index: 7, kind: input, shape index: {}]
  %s8 = inlined_call_operand.vmem [shape: f32[1,8], index: 8, kind: input, shape index: {}]
  %s9 = inlined_call_operand.vmem [shape: f32[32,8], index: 9, kind: output, shape index: {}]
  %s10 = sld [smem:[#allocation0]]
  $region46: #{tpu_custom_call.1} parent=0
    _
  %s12 = ssub.s32 1, %s10
  %s13 = scalar_select 0, %s12, %s10
  // Predicated region
  $region2: #{tpu_custom_call.1} parent=0 // pred_check
    _
  $region3: #{tpu_custom_call.1} parent=0 // pred_check_branch
    %15 = sbr.rel (0) target = $region5
  $region4: #{tpu_custom_call.1} parent=0 // pred_region
    _
  $region5: #{tpu_custom_call.1} parent=0 // pred_fallthru
    _
  // Predicated region
  $region6: #{tpu_custom_call.1} parent=0 // pred_check
    _
  $region7: #{tpu_custom_call.1} parent=0 // pred_check_branch
    %17 = sbr.rel (0) target = $region9
  $region8: #{tpu_custom_call.1} parent=0 // pred_region
    _
  $region9: #{tpu_custom_call.1} parent=0 // pred_fallthru
    _
  // Predicated region
  $region10: #{tpu_custom_call.1} parent=0 // pred_check
    _
  $region11: #{tpu_custom_call.1} parent=0 // pred_check_branch
    %19 = sbr.rel (0) target = $region13
  $region12: #{tpu_custom_call.1} parent=0 // pred_region
    _
  $region13: #{tpu_custom_call.1} parent=0 // pred_fallthru
    _
  // Predicated region
  $region14: #{tpu_custom_call.1} parent=0 // pred_check
    _
  $region15: #{tpu_custom_call.1} parent=0 // pred_check_branch
    %21 = sbr.rel (0) target = $region17
  $region16: #{tpu_custom_call.1} parent=0 // pred_region
    _
  $region17: #{tpu_custom_call.1} parent=0 // pred_fallthru
    _
  // Predicated region
  $region18: #{tpu_custom_call.1} parent=0 // pred_check
    _
  $region19: #{tpu_custom_call.1} parent=0 // pred_check_branch
    %23 = sbr.rel (0) target = $region21
  $region20: #{tpu_custom_call.1} parent=0 // pred_region
    _
  $region21: #{tpu_custom_call.1} parent=0 // pred_fallthru
    _
  // Predicated region
  $region22: #{tpu_custom_call.1} parent=0 // pred_check
    _
  $region23: #{tpu_custom_call.1} parent=0 // pred_check_branch
    %25 = sbr.rel (0) target = $region25
  $region24: #{tpu_custom_call.1} parent=0 // pred_region
    _
  $region25: #{tpu_custom_call.1} parent=0 // pred_fallthru
    _
  // Predicated region
  $region26: #{tpu_custom_call.1} parent=0 // pred_check
    _
  $region27: #{tpu_custom_call.1} parent=0 // pred_check_branch
    %27 = sbr.rel (0) target = $region29
  $region28: #{tpu_custom_call.1} parent=0 // pred_region
    _
  $region29: #{tpu_custom_call.1} parent=0 // pred_fallthru
    _
  // Predicated region
  $region30: #{tpu_custom_call.1} parent=0 // pred_check
    _
  $region31: #{tpu_custom_call.1} parent=0 // pred_check_branch
    %29 = sbr.rel (0) target = $region33
  $region32: #{tpu_custom_call.1} parent=0 // pred_region
    _
  $region33: #{tpu_custom_call.1} parent=0 // pred_fallthru
    _
  // Predicated region
  $region34: #{tpu_custom_call.1} parent=0 // pred_check
    _
  $region35: #{tpu_custom_call.1} parent=0 // pred_check_branch
    %31 = sbr.rel (0) target = $region37
  $region36: #{tpu_custom_call.1} parent=0 // pred_region
    _
  $region37: #{tpu_custom_call.1} parent=0 // pred_fallthru
    _
  %v32 = vld [vmem:[%s0] sm:$0xff]
  %v33 = vld [vmem:[%s0 + $0x8] sm:$0xff]
  %v34 = vld [vmem:[%s0 + $0x10] sm:$0xff]
  %v35 = vld [vmem:[%s0 + $0x18] sm:$0xff]
  %v36 = vld [vmem:[%s1] sm:$0xff]
  %v37 = vld [vmem:[%s1 + $0x8] sm:$0xff]
  %vm38 = vcmask 130048
  %v40 = vsel %vm38, %v32, 0
  %v43 = vsel %vm38, %v33, 0
  %v46 = vsel %vm38, %v34, 0
  %v49 = vsel %vm38, %v35, 0
  %51 = vmatprep.subr.mxu0 0.0
  %52 = vmatpush1.msra.mxu0 %v36
  %53 = vmatprep.subr.mxu0 0.0
  %54 = vmatpush1.msra.mxu0 %v37
  %55 = vmatprep.subr.mxu0 0.0
  %56 = vmatpush1.msra.mxu0 0.0
  %57 = vmatprep.subr.mxu0 0.0
  %58 = vmatpush1.msra.mxu0 0.0
  %59 = vmatprep.subr.mxu0 0.0
  %60 = vmatpush1.msra.mxu0 0.0
  %61 = vmatprep.subr.mxu0 0.0
  %62 = vmatpush1.msra.mxu0 0.0
  %63 = vmatprep.subr.mxu0 0.0
  %64 = vmatpush1.msra.mxu0 0.0
  %65 = vmatprep.subr.mxu0 0.0
  %66 = vmatpush1.msra.mxu0 0.0
  %67 = vmatprep.subr.mxu0 0.0
  %68 = vmatpush1.msra.mxu0 0.0
  %69 = vmatprep.subr.mxu0 0.0
  %70 = vmatpush1.msra.mxu0 0.0
  %71 = vmatprep.subr.mxu0 0.0
  %72 = vmatpush1.msra.mxu0 0.0
  %73 = vmatprep.subr.mxu0 0.0
  %74 = vmatpush1.msra.mxu0 0.0
  %75 = vmatprep.subr.mxu0 0.0
  %76 = vmatpush1.msra.mxu0 0.0
  %77 = vmatprep.subr.mxu0 0.0
  %78 = vmatpush1.msra.mxu0 0.0
  %79 = vmatprep.subr.mxu0 0.0
  %80 = vmatpush1.msra.mxu0 0.0
  %81 = vmatprep.subr.mxu0 0.0
  %82 = vmatpush1.msra.mxu0 0.0
  %83 = vmatprep.subr.mxu0 0.0
  %84 = vmatpush1.msra.mxu0 0.0
  %85 = vmatprep.subr.mxu0 0.0
  %86 = vmatpush1.msra.mxu0 0.0
  %87 = vmatprep.subr.mxu0 0.0
  %88 = vmatpush1.msra.mxu0 0.0
  %89 = vmatprep.subr.mxu0 0.0
  %90 = vmatpush1.msra.mxu0 0.0
  %91 = vmatprep.subr.mxu0 0.0
  %92 = vmatpush1.msra.mxu0 0.0
  %93 = vmatprep.subr.mxu0 0.0
  %94 = vmatpush1.msra.mxu0 0.0
  %95 = vmatprep.subr.mxu0 0.0
  %96 = vmatpush1.msra.mxu0 0.0
  %97 = vmatprep.subr.mxu0 0.0
  %98 = vmatpush1.msra.mxu0 0.0
  %99 = vmatprep.subr.mxu0 0.0
  %100 = vmatpush1.msra.mxu0 0.0
  %101 = vmatprep.subr.mxu0 0.0
  %102 = vmatpush1.msra.mxu0 0.0
  %103 = vmatprep.subr.mxu0 0.0
  %104 = vmatpush1.msra.mxu0 0.0
  %105 = vmatprep.subr.mxu0 0.0
  %106 = vmatpush1.msra.mxu0 0.0
  %107 = vmatprep.subr.mxu0 0.0
  %108 = vmatpush1.msra.mxu0 0.0
  %109 = vmatprep.subr.mxu0 0.0
  %110 = vmatpush1.msra.mxu0 0.0
  %111 = vmatprep.subr.mxu0 0.0
  %112 = vmatpush1.msra.mxu0 0.0
  %113 = vmatprep.subr.mxu0 0.0
  %114 = vmatpush1.msra.mxu0 0.0
  %115 = vmatprep.mubr.f32.mxu0 0.0
  %116 = vmatmul.mubr.f32.gmra.mrb[0].mxu0 %v40
  %v117 = vpop.f32.mrb[0].mxu0
  %v118 = vadd.f32 0.0, %v117
  %v119 = vpop.f32.mrb[0].mxu0
  %120 = vmatprep.mubr.f32.mxu0 0.0
  %121 = vmatmul.mubr.f32.gmra.mrb[0].mxu0 %v43
  %v122 = vpop.f32.mrb[0].mxu0
  %v123 = vadd.f32 0.0, %v122
  %v124 = vpop.f32.mrb[0].mxu0
  %125 = vmatprep.mubr.f32.mxu0 0.0
  %126 = vmatmul.mubr.f32.gmra.mrb[0].mxu0 %v46
  %v127 = vpop.f32.mrb[0].mxu0
  %v128 = vadd.f32 0.0, %v127
  %v129 = vpop.f32.mrb[0].mxu0
  %130 = vmatprep.mubr.f32.mxu0 0.0
  %131 = vmatmul.mubr.f32.gmra.mrb[0].mxu0 %v49
  %v132 = vpop.f32.mrb[0].mxu0
  %v133 = vadd.f32 0.0, %v132
  %v134 = vpop.f32.mrb[0].mxu0
  %135 = vdwg.mxu0
  %vm136 = vcmask 261120
  %v137 = vsel %vm136, %v118, 0.0
  %v138 = vrot.slane %v137, 4
  %v139 = vadd.f32 %v137, %v138
  %v140 = vrot.slane %v139, 2
  %v141 = vadd.f32 %v139, %v140
  %v142 = vrot.slane %v141, 1
  %v143 = vadd.f32 %v141, %v142
  %v144 = vsel %vm136, %v123, 0.0
  %v145 = vrot.slane %v144, 4
  %v146 = vadd.f32 %v144, %v145
  %v147 = vrot.slane %v146, 2
  %v148 = vadd.f32 %v146, %v147
  %v149 = vrot.slane %v148, 1
  %v150 = vadd.f32 %v148, %v149
  %v151 = vsel %vm136, %v128, 0.0
  %v152 = vrot.slane %v151, 4
  %v153 = vadd.f32 %v151, %v152
  %v154 = vrot.slane %v153, 2
  %v155 = vadd.f32 %v153, %v154
  %v156 = vrot.slane %v155, 1
  %v157 = vadd.f32 %v155, %v156
  %v158 = vsel %vm136, %v133, 0.0
  %v159 = vrot.slane %v158, 4
  %v160 = vadd.f32 %v158, %v159
  %v161 = vrot.slane %v160, 2
  %v162 = vadd.f32 %v160, %v161
  %v163 = vrot.slane %v162, 1
  %v164 = vadd.f32 %v162, %v163
  %v165 = vrcp.pop 8.0
  %v166 = vmul.f32 %v143, %v165
  %v167 = vmul.f32 %v150, %v165
  %v168 = vmul.f32 %v157, %v165
  %v169 = vmul.f32 %v164, %v165
  %v170 = vsub.f32 %v118, %v166
  %v171 = vsub.f32 %v123, %v167
  %v172 = vsub.f32 %v128, %v168
  %v173 = vsub.f32 %v133, %v169
  %v174 = vmul.f32 %v170, %v170
  %v175 = vmul.f32 %v171, %v171
  %v176 = vmul.f32 %v172, %v172
  %v177 = vmul.f32 %v173, %v173
  %v178 = vsel %vm136, %v174, 0.0
  %v179 = vrot.slane %v178, 4
  %v180 = vadd.f32 %v178, %v179
  %v181 = vrot.slane %v180, 2
  %v182 = vadd.f32 %v180, %v181
  %v183 = vrot.slane %v182, 1
  %v184 = vadd.f32 %v182, %v183
  %v185 = vsel %vm136, %v175, 0.0
  %v186 = vrot.slane %v185, 4
  %v187 = vadd.f32 %v185, %v186
  %v188 = vrot.slane %v187, 2
  %v189 = vadd.f32 %v187, %v188
  %v190 = vrot.slane %v189, 1
  %v191 = vadd.f32 %v189, %v190
  %v192 = vsel %vm136, %v176, 0.0
  %v193 = vrot.slane %v192, 4
  %v194 = vadd.f32 %v192, %v193
  %v195 = vrot.slane %v194, 2
  %v196 = vadd.f32 %v194, %v195
  %v197 = vrot.slane %v196, 1
  %v198 = vadd.f32 %v196, %v197
  %v199 = vsel %vm136, %v177, 0.0
  %v200 = vrot.slane %v199, 4
  %v201 = vadd.f32 %v199, %v200
  %v202 = vrot.slane %v201, 2
  %v203 = vadd.f32 %v201, %v202
  %v204 = vrot.slane %v203, 1
  %v205 = vadd.f32 %v203, %v204
  %v206 = vmul.f32 %v184, %v165
  %v207 = vmul.f32 %v191, %v165
  %v208 = vmul.f32 %v198, %v165
  %v209 = vmul.f32 %v205, %v165
  %v210 = vld [vmem:[%s2] sm:$0x1]
  %v211 = vadd.f32 %v206, 1e-05
  %v212 = vadd.f32 %v207, 1e-05
  %v213 = vadd.f32 %v208, 1e-05
  %v214 = vadd.f32 %v209, 1e-05
  %v215 = vrsqrt.pop %v211
  %v216 = vrsqrt.pop %v212
  %v217 = vrsqrt.pop %v213
  %v218 = vrsqrt.pop %v214
  %v219 = vmul.f32 %v210, %v215
  %v220 = vmul.f32 %v210, %v216
  %v221 = vmul.f32 %v210, %v217
  %v222 = vmul.f32 %v210, %v218
  %v223 = vld [vmem:[%s3] sm:$0x1]
  %v224 = vmul.f32 %v166, %v219
  %v225 = vmul.f32 %v167, %v220
  %v226 = vmul.f32 %v168, %v221
  %v227 = vmul.f32 %v169, %v222
  %v228 = vsub.f32 %v223, %v224
  %v229 = vsub.f32 %v223, %v225
  %v230 = vsub.f32 %v223, %v226
  %v231 = vsub.f32 %v223, %v227
  %v236 = vlaneseq
  %v237 = vshrl.u32 %v236, 7
  %v238 = vsub.s32 0, %v237
  %v239 = vrot.slane %v219, %v238
  %v240 = vlaneseq
  %v241 = vshrl.u32 %v240, 7
  %v242 = vsub.s32 0, %v241
  %v243 = vrot.slane %v220, %v242
  %v244 = vlaneseq
  %v245 = vshrl.u32 %v244, 7
  %v246 = vsub.s32 0, %v245
  %v247 = vrot.slane %v221, %v246
  %v248 = vlaneseq
  %v249 = vshrl.u32 %v248, 7
  %v250 = vsub.s32 0, %v249
  %v251 = vrot.slane %v222, %v250
  %v256 = vmul.f32 %v118, %v239
  %v257 = vmul.f32 %v123, %v243
  %v258 = vmul.f32 %v128, %v247
  %v259 = vmul.f32 %v133, %v251
  %v264 = vlaneseq
  %v265 = vshrl.u32 %v264, 7
  %v266 = vsub.s32 0, %v265
  %v267 = vrot.slane %v228, %v266
  %v268 = vlaneseq
  %v269 = vshrl.u32 %v268, 7
  %v270 = vsub.s32 0, %v269
  %v271 = vrot.slane %v229, %v270
  %v272 = vlaneseq
  %v273 = vshrl.u32 %v272, 7
  %v274 = vsub.s32 0, %v273
  %v275 = vrot.slane %v230, %v274
  %v276 = vlaneseq
  %v277 = vshrl.u32 %v276, 7
  %v278 = vsub.s32 0, %v277
  %v279 = vrot.slane %v231, %v278
  %v284 = vadd.f32 %v256, %v267
  %v285 = vadd.f32 %v257, %v271
  %v286 = vadd.f32 %v258, %v275
  %v287 = vadd.f32 %v259, %v279
  %v288 = vmax.f32 %v284, 0.0
  %v289 = vmax.f32 %v285, 0.0
  %v290 = vmax.f32 %v286, 0.0
  %v291 = vmax.f32 %v287, 0.0
  %v292 = vld [vmem:[%s4] sm:$0xff]
  %v293 = vld [vmem:[%s4 + $0x8] sm:$0xff]
  %v294 = vld [vmem:[%s4 + $0x10] sm:$0xff]
  %v295 = vld [vmem:[%s4 + $0x18] sm:$0xff]
  %v297 = vsel %vm136, %v288, 0
  %v300 = vsel %vm136, %v289, 0
  %v303 = vsel %vm136, %v290, 0
  %v306 = vsel %vm136, %v291, 0
  %308 = vmatprep.subr.mxu0 0.0
  %309 = vmatpush1.msra.mxu0 %v292
  %310 = vmatprep.subr.mxu0 0.0
  %311 = vmatpush1.msra.mxu0 %v293
  %312 = vmatprep.subr.mxu0 0.0
  %313 = vmatpush1.msra.mxu0 %v294
  %314 = vmatprep.subr.mxu0 0.0
  %315 = vmatpush1.msra.mxu0 %v295
  %316 = vmatprep.subr.mxu0 0.0
  %317 = vmatpush1.msra.mxu0 0.0
  %318 = vmatprep.subr.mxu0 0.0
  %319 = vmatpush1.msra.mxu0 0.0
  %320 = vmatprep.subr.mxu0 0.0
  %321 = vmatpush1.msra.mxu0 0.0
  %322 = vmatprep.subr.mxu0 0.0
  %323 = vmatpush1.msra.mxu0 0.0
  %324 = vmatprep.subr.mxu0 0.0
  %325 = vmatpush1.msra.mxu0 0.0
  %326 = vmatprep.subr.mxu0 0.0
  %327 = vmatpush1.msra.mxu0 0.0
  %328 = vmatprep.subr.mxu0 0.0
  %329 = vmatpush1.msra.mxu0 0.0
  %330 = vmatprep.subr.mxu0 0.0
  %331 = vmatpush1.msra.mxu0 0.0
  %332 = vmatprep.subr.mxu0 0.0
  %333 = vmatpush1.msra.mxu0 0.0
  %334 = vmatprep.subr.mxu0 0.0
  %335 = vmatpush1.msra.mxu0 0.0
  %336 = vmatprep.subr.mxu0 0.0
  %337 = vmatpush1.msra.mxu0 0.0
  %338 = vmatprep.subr.mxu0 0.0
  %339 = vmatpush1.msra.mxu0 0.0
  %340 = vmatprep.subr.mxu0 0.0
  %341 = vmatpush1.msra.mxu0 0.0
  %342 = vmatprep.subr.mxu0 0.0
  %343 = vmatpush1.msra.mxu0 0.0
  %344 = vmatprep.subr.mxu0 0.0
  %345 = vmatpush1.msra.mxu0 0.0
  %346 = vmatprep.subr.mxu0 0.0
  %347 = vmatpush1.msra.mxu0 0.0
  %348 = vmatprep.subr.mxu0 0.0
  %349 = vmatpush1.msra.mxu0 0.0
  %350 = vmatprep.subr.mxu0 0.0
  %351 = vmatpush1.msra.mxu0 0.0
  %352 = vmatprep.subr.mxu0 0.0
  %353 = vmatpush1.msra.mxu0 0.0
  %354 = vmatprep.subr.mxu0 0.0
  %355 = vmatpush1.msra.mxu0 0.0
  %356 = vmatprep.subr.mxu0 0.0
  %357 = vmatpush1.msra.mxu0 0.0
  %358 = vmatprep.subr.mxu0 0.0
  %359 = vmatpush1.msra.mxu0 0.0
  %360 = vmatprep.subr.mxu0 0.0
  %361 = vmatpush1.msra.mxu0 0.0
  %362 = vmatprep.subr.mxu0 0.0
  %363 = vmatpush1.msra.mxu0 0.0
  %364 = vmatprep.subr.mxu0 0.0
  %365 = vmatpush1.msra.mxu0 0.0
  %366 = vmatprep.subr.mxu0 0.0
  %367 = vmatpush1.msra.mxu0 0.0
  %368 = vmatprep.subr.mxu0 0.0
  %369 = vmatpush1.msra.mxu0 0.0
  %370 = vmatprep.subr.mxu0 0.0
  %371 = vmatpush1.msra.mxu0 0.0
  %372 = vmatprep.mubr.f32.mxu0 0.0
  %373 = vmatmul.mubr.f32.gmra.mrb[0].mxu0 %v297
  %v374 = vpop.f32.mrb[0].mxu0
  %v375 = vadd.f32 0.0, %v374
  %v376 = vpop.f32.mrb[0].mxu0
  %377 = vmatprep.mubr.f32.mxu0 0.0
  %378 = vmatmul.mubr.f32.gmra.mrb[0].mxu0 %v300
  %v379 = vpop.f32.mrb[0].mxu0
  %v380 = vadd.f32 0.0, %v379
  %v381 = vpop.f32.mrb[0].mxu0
  %382 = vmatprep.mubr.f32.mxu0 0.0
  %383 = vmatmul.mubr.f32.gmra.mrb[0].mxu0 %v303
  %v384 = vpop.f32.mrb[0].mxu0
  %v385 = vadd.f32 0.0, %v384
  %v386 = vpop.f32.mrb[0].mxu0
  %387 = vmatprep.mubr.f32.mxu0 0.0
  %388 = vmatmul.mubr.f32.gmra.mrb[0].mxu0 %v306
  %v389 = vpop.f32.mrb[0].mxu0
  %v390 = vadd.f32 0.0, %v389
  %v391 = vpop.f32.mrb[0].mxu0
  %392 = vdwg.mxu0
  %v393 = vsel %vm136, %v375, 0.0
  %v394 = vrot.slane %v393, 4
  %v395 = vadd.f32 %v393, %v394
  %v396 = vrot.slane %v395, 2
  %v397 = vadd.f32 %v395, %v396
  %v398 = vrot.slane %v397, 1
  %v399 = vadd.f32 %v397, %v398
  %v400 = vsel %vm136, %v380, 0.0
  %v401 = vrot.slane %v400, 4
  %v402 = vadd.f32 %v400, %v401
  %v403 = vrot.slane %v402, 2
  %v404 = vadd.f32 %v402, %v403
  %v405 = vrot.slane %v404, 1
  %v406 = vadd.f32 %v404, %v405
  %v407 = vsel %vm136, %v385, 0.0
  %v408 = vrot.slane %v407, 4
  %v409 = vadd.f32 %v407, %v408
  %v410 = vrot.slane %v409, 2
  %v411 = vadd.f32 %v409, %v410
  %v412 = vrot.slane %v411, 1
  %v413 = vadd.f32 %v411, %v412
  %v414 = vsel %vm136, %v390, 0.0
  %v415 = vrot.slane %v414, 4
  %v416 = vadd.f32 %v414, %v415
  %v417 = vrot.slane %v416, 2
  %v418 = vadd.f32 %v416, %v417
  %v419 = vrot.slane %v418, 1
  %v420 = vadd.f32 %v418, %v419
  %v421 = vmul.f32 %v399, %v165
  %v422 = vmul.f32 %v406, %v165
  %v423 = vmul.f32 %v413, %v165
  %v424 = vmul.f32 %v420, %v165
  %v425 = vsub.f32 %v375, %v421
  %v426 = vsub.f32 %v380, %v422
  %v427 = vsub.f32 %v385, %v423
  %v428 = vsub.f32 %v390, %v424
  %v429 = vmul.f32 %v425, %v425
  %v430 = vmul.f32 %v426, %v426
  %v431 = vmul.f32 %v427, %v427
  %v432 = vmul.f32 %v428, %v428
  %v433 = vsel %vm136, %v429, 0.0
  %v434 = vrot.slane %v433, 4
  %v435 = vadd.f32 %v433, %v434
  %v436 = vrot.slane %v435, 2
  %v437 = vadd.f32 %v435, %v436
  %v438 = vrot.slane %v437, 1
  %v439 = vadd.f32 %v437, %v438
  %v440 = vsel %vm136, %v430, 0.0
  %v441 = vrot.slane %v440, 4
  %v442 = vadd.f32 %v440, %v441
  %v443 = vrot.slane %v442, 2
  %v444 = vadd.f32 %v442, %v443
  %v445 = vrot.slane %v444, 1
  %v446 = vadd.f32 %v444, %v445
  %v447 = vsel %vm136, %v431, 0.0
  %v448 = vrot.slane %v447, 4
  %v449 = vadd.f32 %v447, %v448
  %v450 = vrot.slane %v449, 2
  %v451 = vadd.f32 %v449, %v450
  %v452 = vrot.slane %v451, 1
  %v453 = vadd.f32 %v451, %v452
  %v454 = vsel %vm136, %v432, 0.0
  %v455 = vrot.slane %v454, 4
  %v456 = vadd.f32 %v454, %v455
  %v457 = vrot.slane %v456, 2
  %v458 = vadd.f32 %v456, %v457
  %v459 = vrot.slane %v458, 1
  %v460 = vadd.f32 %v458, %v459
  %v461 = vmul.f32 %v439, %v165
  %v462 = vmul.f32 %v446, %v165
  %v463 = vmul.f32 %v453, %v165
  %v464 = vmul.f32 %v460, %v165
  %v465 = vld [vmem:[%s5] sm:$0x1]
  %v466 = vadd.f32 %v461, 1e-05
  %v467 = vadd.f32 %v462, 1e-05
  %v468 = vadd.f32 %v463, 1e-05
  %v469 = vadd.f32 %v464, 1e-05
  %v470 = vrsqrt.pop %v466
  %v471 = vrsqrt.pop %v467
  %v472 = vrsqrt.pop %v468
  %v473 = vrsqrt.pop %v469
  %v474 = vmul.f32 %v465, %v470
  %v475 = vmul.f32 %v465, %v471
  %v476 = vmul.f32 %v465, %v472
  %v477 = vmul.f32 %v465, %v473
  %v478 = vld [vmem:[%s6] sm:$0x1]
  %v479 = vmul.f32 %v421, %v474
  %v480 = vmul.f32 %v422, %v475
  %v481 = vmul.f32 %v423, %v476
  %v482 = vmul.f32 %v424, %v477
  %v483 = vsub.f32 %v478, %v479
  %v484 = vsub.f32 %v478, %v480
  %v485 = vsub.f32 %v478, %v481
  %v486 = vsub.f32 %v478, %v482
  %v491 = vlaneseq
  %v492 = vshrl.u32 %v491, 7
  %v493 = vsub.s32 0, %v492
  %v494 = vrot.slane %v474, %v493
  %v495 = vlaneseq
  %v496 = vshrl.u32 %v495, 7
  %v497 = vsub.s32 0, %v496
  %v498 = vrot.slane %v475, %v497
  %v499 = vlaneseq
  %v500 = vshrl.u32 %v499, 7
  %v501 = vsub.s32 0, %v500
  %v502 = vrot.slane %v476, %v501
  %v503 = vlaneseq
  %v504 = vshrl.u32 %v503, 7
  %v505 = vsub.s32 0, %v504
  %v506 = vrot.slane %v477, %v505
  %v511 = vmul.f32 %v375, %v494
  %v512 = vmul.f32 %v380, %v498
  %v513 = vmul.f32 %v385, %v502
  %v514 = vmul.f32 %v390, %v506
  %v519 = vlaneseq
  %v520 = vshrl.u32 %v519, 7
  %v521 = vsub.s32 0, %v520
  %v522 = vrot.slane %v483, %v521
  %v523 = vlaneseq
  %v524 = vshrl.u32 %v523, 7
  %v525 = vsub.s32 0, %v524
  %v526 = vrot.slane %v484, %v525
  %v527 = vlaneseq
  %v528 = vshrl.u32 %v527, 7
  %v529 = vsub.s32 0, %v528
  %v530 = vrot.slane %v485, %v529
  %v531 = vlaneseq
  %v532 = vshrl.u32 %v531, 7
  %v533 = vsub.s32 0, %v532
  %v534 = vrot.slane %v486, %v533
  %v539 = vadd.f32 %v511, %v522
  %v540 = vadd.f32 %v512, %v526
  %v541 = vadd.f32 %v513, %v530
  %v542 = vadd.f32 %v514, %v534
  %v543 = vmax.f32 %v539, 0.0
  %v544 = vmax.f32 %v540, 0.0
  %v545 = vmax.f32 %v541, 0.0
  %v546 = vmax.f32 %v542, 0.0
  %v547 = vld [vmem:[%s7] sm:$0xff]
  %v548 = vld [vmem:[%s7 + $0x8] sm:$0xff]
  %v549 = vld [vmem:[%s7 + $0x10] sm:$0xff]
  %v550 = vld [vmem:[%s7 + $0x18] sm:$0xff]
  %v551 = vld [vmem:[%s8] sm:$0x1]
  %v553 = vlaneseq
  %v554 = vshrl.u32 %v553, 7
  %v555 = vsub.s32 0, %v554
  %v556 = vrot.slane %v551, %v555
  %v559 = vsel %vm136, %v543, 0
  %v562 = vsel %vm136, %v544, 0
  %v565 = vsel %vm136, %v545, 0
  %v568 = vsel %vm136, %v546, 0
  %570 = vmatprep.subr.mxu0 0.0
  %571 = vmatpush1.msra.mxu0 %v547
  %572 = vmatprep.subr.mxu0 0.0
  %573 = vmatpush1.msra.mxu0 %v548
  %574 = vmatprep.subr.mxu0 0.0
  %575 = vmatpush1.msra.mxu0 %v549
  %576 = vmatprep.subr.mxu0 0.0
  %577 = vmatpush1.msra.mxu0 %v550
  %578 = vmatprep.subr.mxu0 0.0
  %579 = vmatpush1.msra.mxu0 0.0
  %580 = vmatprep.subr.mxu0 0.0
  %581 = vmatpush1.msra.mxu0 0.0
  %582 = vmatprep.subr.mxu0 0.0
  %583 = vmatpush1.msra.mxu0 0.0
  %584 = vmatprep.subr.mxu0 0.0
  %585 = vmatpush1.msra.mxu0 0.0
  %586 = vmatprep.subr.mxu0 0.0
  %587 = vmatpush1.msra.mxu0 0.0
  %588 = vmatprep.subr.mxu0 0.0
  %589 = vmatpush1.msra.mxu0 0.0
  %590 = vmatprep.subr.mxu0 0.0
  %591 = vmatpush1.msra.mxu0 0.0
  %592 = vmatprep.subr.mxu0 0.0
  %593 = vmatpush1.msra.mxu0 0.0
  %594 = vmatprep.subr.mxu0 0.0
  %595 = vmatpush1.msra.mxu0 0.0
  %596 = vmatprep.subr.mxu0 0.0
  %597 = vmatpush1.msra.mxu0 0.0
  %598 = vmatprep.subr.mxu0 0.0
  %599 = vmatpush1.msra.mxu0 0.0
  %600 = vmatprep.subr.mxu0 0.0
  %601 = vmatpush1.msra.mxu0 0.0
  %602 = vmatprep.subr.mxu0 0.0
  %603 = vmatpush1.msra.mxu0 0.0
  %604 = vmatprep.subr.mxu0 0.0
  %605 = vmatpush1.msra.mxu0 0.0
  %606 = vmatprep.subr.mxu0 0.0
  %607 = vmatpush1.msra.mxu0 0.0
  %608 = vmatprep.subr.mxu0 0.0
  %609 = vmatpush1.msra.mxu0 0.0
  %610 = vmatprep.subr.mxu0 0.0
  %611 = vmatpush1.msra.mxu0 0.0
  %612 = vmatprep.subr.mxu0 0.0
  %613 = vmatpush1.msra.mxu0 0.0
  %614 = vmatprep.subr.mxu0 0.0
  %615 = vmatpush1.msra.mxu0 0.0
  %616 = vmatprep.subr.mxu0 0.0
  %617 = vmatpush1.msra.mxu0 0.0
  %618 = vmatprep.subr.mxu0 0.0
  %619 = vmatpush1.msra.mxu0 0.0
  %620 = vmatprep.subr.mxu0 0.0
  %621 = vmatpush1.msra.mxu0 0.0
  %622 = vmatprep.subr.mxu0 0.0
  %623 = vmatpush1.msra.mxu0 0.0
  %624 = vmatprep.subr.mxu0 0.0
  %625 = vmatpush1.msra.mxu0 0.0
  %626 = vmatprep.subr.mxu0 0.0
  %627 = vmatpush1.msra.mxu0 0.0
  %628 = vmatprep.subr.mxu0 0.0
  %629 = vmatpush1.msra.mxu0 0.0
  %630 = vmatprep.subr.mxu0 0.0
  %631 = vmatpush1.msra.mxu0 0.0
  %632 = vmatprep.subr.mxu0 0.0
  %633 = vmatpush1.msra.mxu0 0.0
  %634 = vmatprep.mubr.f32.mxu0 0.0
  %635 = vmatmul.mubr.f32.gmra.mrb[0].mxu0 %v559
  %v636 = vpop.f32.mrb[0].mxu0
  %v637 = vadd.f32 %v556, %v636
  %v638 = vpop.f32.mrb[0].mxu0
  %639 = vmatprep.mubr.f32.mxu0 0.0
  %640 = vmatmul.mubr.f32.gmra.mrb[0].mxu0 %v562
  %v641 = vpop.f32.mrb[0].mxu0
  %v642 = vadd.f32 %v556, %v641
  %v643 = vpop.f32.mrb[0].mxu0
  %644 = vmatprep.mubr.f32.mxu0 0.0
  %645 = vmatmul.mubr.f32.gmra.mrb[0].mxu0 %v565
  %v646 = vpop.f32.mrb[0].mxu0
  %v647 = vadd.f32 %v556, %v646
  %v648 = vpop.f32.mrb[0].mxu0
  %649 = vmatprep.mubr.f32.mxu0 0.0
  %650 = vmatmul.mubr.f32.gmra.mrb[0].mxu0 %v568
  %v651 = vpop.f32.mrb[0].mxu0
  %v652 = vadd.f32 %v556, %v651
  %v653 = vpop.f32.mrb[0].mxu0
  %654 = vdwg.mxu0
  %vm655 = vcmask 64512
  %v656 = vsel %vm655, %v637, -inf
  %657 = vmax.xlane.f32.xlu0 %v656
  %v658 = vpop.xlane.xlu0 %657
  %v659 = vsel %vm655, %v642, -inf
  %660 = vmax.xlane.f32.xlu0 %v659
  %v661 = vpop.xlane.xlu0 %660
  %v662 = vsel %vm655, %v647, -inf
  %663 = vmax.xlane.f32.xlu0 %v662
  %v664 = vpop.xlane.xlu0 %663
  %v665 = vsel %vm655, %v652, -inf
  %666 = vmax.xlane.f32.xlu0 %v665
  %v667 = vpop.xlane.xlu0 %666
  %v668 = vsub.f32 %v637, %v658
  %v669 = vsub.f32 %v642, %v661
  %v670 = vsub.f32 %v647, %v664
  %v671 = vsub.f32 %v652, %v667
  %v672 = vmul.f32 %v668, 1.442695
  %v673 = vpow.pop %v672
  %v674 = vmul.f32 %v669, 1.442695
  %v675 = vpow.pop %v674
  %v676 = vmul.f32 %v670, 1.442695
  %v677 = vpow.pop %v676
  %v678 = vmul.f32 %v671, 1.442695
  %v679 = vpow.pop %v678
  %v680 = vsel %vm655, %v673, 0.0
  %681 = vadd.xlane.f32.xlu0 %v680
  %v682 = vpop.xlane.xlu0 %681
  %v683 = vsel %vm655, %v675, 0.0
  %684 = vadd.xlane.f32.xlu0 %v683
  %v685 = vpop.xlane.xlu0 %684
  %v686 = vsel %vm655, %v677, 0.0
  %687 = vadd.xlane.f32.xlu0 %v686
  %v688 = vpop.xlane.xlu0 %687
  %v689 = vsel %vm655, %v679, 0.0
  %690 = vadd.xlane.f32.xlu0 %v689
  %v691 = vpop.xlane.xlu0 %690
  %v692 = vrcp.pop %v682
  %v693 = vmul.f32 %v673, %v692
  %v694 = vrcp.pop %v685
  %v695 = vmul.f32 %v675, %v694
  %v696 = vrcp.pop %v688
  %v697 = vmul.f32 %v677, %v696
  %v698 = vrcp.pop %v691
  %v699 = vmul.f32 %v679, %v698
  %700 = vst.msk [vmem:[%s9] sm:$0xff] %vm655, %v693
  %701 = vst.msk [vmem:[%s9 + $0x8] sm:$0xff] %vm655, %v695
  %702 = vst.msk [vmem:[%s9 + $0x10] sm:$0xff] %vm655, %v697
  %703 = vst.msk [vmem:[%s9 + $0x18] sm:$0xff] %vm655, %v699
  // Predicated region
  $region38: #{tpu_custom_call.1} parent=0 // pred_check
    _
  $region39: #{tpu_custom_call.1} parent=0 // pred_check_branch
    %705 = sbr.rel (0) target = $region41
  $region40: #{tpu_custom_call.1} parent=0 // pred_region
    _
  $region41: #{tpu_custom_call.1} parent=0 // pred_fallthru
    _
  // Predicated region
  $region42: #{tpu_custom_call.1} parent=0 // pred_check
    _
  $region43: #{tpu_custom_call.1} parent=0 // pred_check_branch
    %707 = sbr.rel (0) target = $region45
  $region44: #{tpu_custom_call.1} parent=0 // pred_region
    _
  $region45: #{tpu_custom_call.1} parent=0 // pred_fallthru
    _

</llo_original>
